<compile_context>
chip_gen: v6e
topology: v6e:2x2x1
jax: 0.10.0
libtpu: 0.0.40
codegen_flags: <defaults>
</compile_context>

<pallas_src>
import jax
import jax.numpy as jnp
from jax.experimental import pallas as pl
from jax.experimental.pallas import tpu as pltpu

TILE_B_MAX = 512  # lanes (batch examples) per grid step; multiple of 128


def _round_up(n, m):
    return ((n + m - 1) // m) * m


def make_neural_network_forward(w1, b1, w2, b2):
    """Bake parameters as compile-time constants and return a jitted forward(x)
    matching the PyTorch module.

    w1: (2, 2) PyTorch layout (out, in);  b1: (2,)
    w2: (1, 2) PyTorch layout (out, in);  b2: (1,)
    """
    w1 = jnp.asarray(w1, jnp.float32)
    b1 = jnp.asarray(b1, jnp.float32)
    w2 = jnp.asarray(w2, jnp.float32)
    b2 = jnp.asarray(b2, jnp.float32)

    # Python float immediates -> folded into vreg constants by Mosaic.
    w00, w01 = float(w1[0, 0]), float(w1[0, 1])
    w10, w11 = float(w1[1, 0]), float(w1[1, 1])
    c10, c11 = float(b1[0]), float(b1[1])
    v0, v1 = float(w2[0, 0]), float(w2[0, 1])
    c2 = float(b2[0])

    def kernel(x_ref, o_ref):
        # x_ref: (2, tile_b) f32 VMEM  row 0 = feature 0 over batch lanes, row 1 = feature 1
        # o_ref: (1, tile_b) f32 VMEM  logits over batch lanes (lane-dense store)
        x0 = x_ref[0:1, :]                               # (1, tile_b)
        x1 = x_ref[1:2, :]                               # (1, tile_b)
        # layer 1: build both pre-activation rows as one (2, tile_b) slab, single EUP sigmoid
        z = jnp.concatenate(
            [x0 * w00 + x1 * w01 + c10,
             x0 * w10 + x1 * w11 + c11],
            axis=0,
        )                                                # (2, tile_b)
        h = jax.nn.sigmoid(z)                            # one EUP push
        # layer 2: y = h0*W2[0,0] + h1*W2[0,1] + b2
        o_ref[...] = h[0:1, :] * v0 + h[1:2, :] * v1 + c2

    @jax.jit
    def forward(x):
        batch = x.shape[0]
        x2d = x.reshape(batch, -1).astype(jnp.float32)   # nn.Flatten semantics
        assert x2d.shape[1] == 2, "model expects 2 input features after flatten"

        # feature-major layout: rows = features, lanes = batch examples
        xt = x2d.T                                        # (2, batch)
        tile_b = min(TILE_B_MAX, _round_up(batch, 128))
        b_pad = _round_up(batch, tile_b)
        if b_pad != batch:
            xt = jnp.pad(xt, ((0, 0), (0, b_pad - batch)))

        out = pl.pallas_call(
            kernel,
            out_shape=jax.ShapeDtypeStruct((1, b_pad), jnp.float32),
            grid=(b_pad // tile_b,),
            in_specs=[pl.BlockSpec((2, tile_b), lambda i: (0, i))],
            out_specs=pl.BlockSpec((1, tile_b), lambda i: (0, i)),
            compiler_params=pltpu.CompilerParams(
                dimension_semantics=("parallel",)),        # shards batch tiles across v7x's 2 TCs
        )(xt)

        return out[0, :batch][:, None]                    # (batch, 1) logits

    return forward


def _reference_forward(x, w1, b1, w2, b2):
    h = jax.nn.sigmoid(x.reshape(x.shape[0], -1) @ w1.T + b1)
    return h @ w2.T + b2


if __name__ == "__main__":
    key = jax.random.PRNGKey(0)
    kx, k1, kb1, k2, kb2 = jax.random.split(key, 5)

    # input matching X = torch.rand(1, 2)
    x = jax.random.uniform(kx, (1, 2), dtype=jnp.float32)

    # deterministic parameter init (PyTorch Linear shapes: weight (out,in), bias (out,))
    w1 = jax.random.normal(k1, (2, 2), dtype=jnp.float32) * 0.5
    b1 = jax.random.normal(kb1, (2,), dtype=jnp.float32) * 0.1
    w2 = jax.random.normal(k2, (1, 2), dtype=jnp.float32) * 0.5
    b2 = jax.random.normal(kb2, (1,), dtype=jnp.float32) * 0.1

    forward = make_neural_network_forward(w1, b1, w2, b2)

    # batch = 1 (the module's spec)
    logits = jax.block_until_ready(forward(x))
    ref = _reference_forward(x, w1, b1, w2, b2)
    assert logits.shape == (1, 1), logits.shape
    assert jnp.allclose(logits, ref, atol=1e-5), (logits, ref)

    # larger batch exercising the lane grid (2 tiles of 512 lanes + padding)
    xb = jax.random.uniform(jax.random.PRNGKey(1), (600, 2), dtype=jnp.float32)
    out_b = jax.block_until_ready(forward(xb))
    ref_b = _reference_forward(xb, w1, b1, w2, b2)
    assert out_b.shape == (600, 1), out_b.shape
    assert jnp.allclose(out_b, ref_b, atol=1e-5)

    print("KERNEL_OK")
</pallas_src>

<mosaic_0001>
module attributes {stable_mosaic.version = 11 : i64} {
  func.func @kernel(%arg0: i32, %arg1: memref<2x128xf32, #tpu.memory_space<vmem>>, %arg2: memref<1x128xf32, #tpu.memory_space<vmem>>) attributes {dimension_semantics = [#tpu.dimension_semantics<parallel>], iteration_bounds = array<i64: 1>, scalar_prefetch = 0 : i64, scratch_operands = 0 : i64, tpu.core_type = #tpu.core_type<tc>, window_params = [{transform_indices = @transform_0, window_bounds = array<i64: 2, 128>}, {transform_indices = @transform_1, window_bounds = array<i64: 1, 128>}]} {
    %c0 = arith.constant 0 : index
    %c0_0 = arith.constant 0 : index
    %0 = vector.load %arg1[%c0, %c0_0] : memref<2x128xf32, #tpu.memory_space<vmem>>, vector<1x128xf32>
    %c1 = arith.constant 1 : index
    %c0_1 = arith.constant 0 : index
    %1 = vector.load %arg1[%c1, %c0_1] : memref<2x128xf32, #tpu.memory_space<vmem>>, vector<1x128xf32>
    %cst = arith.constant -1.22122788 : f32
    %2 = vector.broadcast %cst : f32 to vector<1x128xf32>
    %3 = arith.mulf %0, %2 : vector<1x128xf32>
    %cst_2 = arith.constant -1.01784027 : f32
    %4 = vector.broadcast %cst_2 : f32 to vector<1x128xf32>
    %5 = arith.mulf %1, %4 : vector<1x128xf32>
    %6 = arith.addf %3, %5 : vector<1x128xf32>
    %cst_3 = arith.constant 0.1295636 : f32
    %7 = vector.broadcast %cst_3 : f32 to vector<1x128xf32>
    %8 = arith.addf %6, %7 : vector<1x128xf32>
    %cst_4 = arith.constant 0.102772117 : f32
    %9 = vector.broadcast %cst_4 : f32 to vector<1x128xf32>
    %10 = arith.mulf %0, %9 : vector<1x128xf32>
    %cst_5 = arith.constant -0.176775098 : f32
    %11 = vector.broadcast %cst_5 : f32 to vector<1x128xf32>
    %12 = arith.mulf %1, %11 : vector<1x128xf32>
    %13 = arith.addf %10, %12 : vector<1x128xf32>
    %cst_6 = arith.constant 0.135501057 : f32
    %14 = vector.broadcast %cst_6 : f32 to vector<1x128xf32>
    %15 = arith.addf %13, %14 : vector<1x128xf32>
    %16 = tpu.concatenate %8, %15 in 0 : vector<1x128xf32>, vector<1x128xf32> -> vector<2x128xf32>
    %17 = arith.negf %16 : vector<2x128xf32>
    %18 = math.exp %17 : vector<2x128xf32>
    %cst_7 = arith.constant 1.000000e+00 : f32
    %19 = vector.broadcast %cst_7 : f32 to vector<2x128xf32>
    %20 = arith.addf %19, %18 : vector<2x128xf32>
    %21 = arith.divf %19, %20 : vector<2x128xf32>
    %22 = vector.extract_strided_slice %21 {offsets = [0, 0], sizes = [1, 128], strides = [1, 1]} : vector<2x128xf32> to vector<1x128xf32>
    %cst_8 = arith.constant -0.310971797 : f32
    %23 = vector.broadcast %cst_8 : f32 to vector<1x128xf32>
    %24 = arith.mulf %22, %23 : vector<1x128xf32>
    %25 = vector.extract_strided_slice %21 {offsets = [1, 0], sizes = [1, 128], strides = [1, 1]} : vector<2x128xf32> to vector<1x128xf32>
    %cst_9 = arith.constant 0.31240204 : f32
    %26 = vector.broadcast %cst_9 : f32 to vector<1x128xf32>
    %27 = arith.mulf %25, %26 : vector<1x128xf32>
    %28 = arith.addf %24, %27 : vector<1x128xf32>
    %cst_10 = arith.constant -0.102088533 : f32
    %29 = vector.broadcast %cst_10 : f32 to vector<1x128xf32>
    %30 = arith.addf %28, %29 : vector<1x128xf32>
    %c0_11 = arith.constant 0 : index
    %c0_12 = arith.constant 0 : index
    %31 = vector.load %arg2[%c0_11, %c0_12] : memref<1x128xf32, #tpu.memory_space<vmem>>, vector<1x128xf32>
    tpu.vector_store %arg2[%c0_11, %c0_12], %30 {strides = array<i32>} : memref<1x128xf32, #tpu.memory_space<vmem>>, vector<1x128xf32>,
    return
  }
  func.func @transform_0(%arg0: i32) -> (i32, i32) {
    %c0_i32 = arith.constant 0 : i32
    %c0_i32_0 = arith.constant 0 : i32
    return %c0_i32, %arg0 : i32, i32
  }
  func.func @transform_1(%arg0: i32) -> (i32, i32) {
    %c0_i32 = arith.constant 0 : i32
    %c0_i32_0 = arith.constant 0 : i32
    return %c0_i32, %arg0 : i32, i32
  }
}

</mosaic_0001>

<llo_original>
// kernel: forward.1
$region0: #{forward.1}
  #allocation0 [shape = 'u32[]', space=smem, size = 0x4, offset = 0x4, fixed_abs, tag = 'smem constant byte address 0x4 - core index']
  #allocation1 [shape = 'u32[144,128]{1,0:T(1,128)}', space=vmem, size = 0x12000, scoped, tag = 'internal scratch']
  %s0 = inlined_call_operand.vmem [shape: f32[2,128], index: 0, kind: input, shape index: {}]
  %s1 = inlined_call_operand.hbm [shape: f32[1,128], index: 1, kind: output, shape index: {}]
  %s2 = sld [smem:[#allocation0]]
  $region14: #{forward.1} parent=0
    _
  %s4 = ssub.s32 1, %s2
  %s5 = scalar_select 0, %s4, %s2
  $region1: #{forward.1} parent=0
    #allocation2 [shape = 'u8[512]{0}', space=vmem, size = 0x400, scoped, tag = 'output window, operand 0, single buffered']
    #allocation3 [shape = 's32[1]{0}', space=sflag, size = 0x4, scoped, tag = 'scoped memory for forward.1']
    %6 = vsyncpa [#allocation3], 0
    // Predicated region
    $region2: #{forward.1} parent=1 // pred_check
      _
    $region3: #{forward.1} parent=1 // pred_check_branch
      %8 = sbr.rel (0) target = $region5
    $region4: #{forward.1} parent=1 // pred_region
      _
    $region5: #{forward.1} parent=1 // pred_fallthru
      _
    %v9 = vld [vmem:[%s0] sm:$0x1]
    %v10 = vld [vmem:[%s0 + $0x1] sm:$0x1]
    %v11 = vmul.f32 %v9, -1.2212279
    %v12 = vmul.f32 %v10, -1.0178403
    %v13 = vadd.f32 %v11, %v12
    %v14 = vadd.f32 %v13, 0.1295636
    %v15 = vmul.f32 %v9, 0.10277212
    %v16 = vmul.f32 %v10, -0.1767751
    %v17 = vadd.f32 %v15, %v16
    %v18 = vadd.f32 %v17, 0.13550106
    %v20 = vrot.slane %v18, 7
    %vm22 = vcmask 1040384
    %v23 = vsel %vm22, %v14, %v20
    %v24 = vxor.u32 %v23, 2147483648
    %v25 = vmul.f32 %v24, 1.442695
    %v26 = vpow.pop %v25
    %v27 = vadd.f32 %v26, 1.0
    %v28 = vrcp.pop %v27
    %v29 = vmul.f32 1.0, %v28
    %v30 = vmul.f32 %v29, -0.3109718
    %v31 = vmul.f32 %v29, 0.31240204
    %v33 = vrot.slane %v31, 1
    %v35 = vadd.f32 %v30, %v33
    %v36 = vadd.f32 %v35, -0.10208853
    %37 = vst [vmem:[#allocation2] sm:$0x1] %v36
    // Predicated region
    $region6: #{forward.1} parent=1 // pred_check
      _
    $region7: #{forward.1} parent=1 // pred_check_branch
      %39 = sbr.rel (0) target = $region9
    $region8: #{forward.1} parent=1 // pred_region
      %s41 = ssub.s32 16, 16
      %42 = vsyncadd [#allocation3], %s41
      %s44 = sshll.u32 [#allocation2], 4
      %s45 = int_to_ptr.vmem [resolvable:$true] %s44
      %47 = dma.vmem_to_hbm [thread:$0]  %s45, 16, %s1, [#allocation3]
    $region9: #{forward.1} parent=1 // pred_fallthru
      _
    // Predicated region
    $region10: #{forward.1} parent=1 // pred_check
      _
    $region11: #{forward.1} parent=1 // pred_check_branch
      %49 = sbr.rel (0) target = $region13
    $region12: #{forward.1} parent=1 // pred_region
      %50 = dma.done [#allocation3], 16
    $region13: #{forward.1} parent=1 // pred_fallthru
      _
    %51 = vsyncpa [#allocation3], 1

</llo_original>
